<compile_context>
chip_gen: v7x
topology: tpu7x:2x2x1
jax: 0.10.0
libtpu: 0.0.40
codegen_flags: <defaults>
</compile_context>

<pallas_src>
import jax
import jax.numpy as jnp
from jax.experimental import pallas as pl
from jax.experimental.pallas import tpu as pltpu

# MiniGrid constants: max(COLOR_TO_IDX.values())+1, max(OBJECT_TO_IDX.values())+1
NUM_COLORS = 6
NUM_OBJECTS = 11
_COL_OFF = NUM_OBJECTS                       # color rows start at 11
_OC_OFF = NUM_OBJECTS + NUM_COLORS           # observed-color rows start at 17
_K_LIVE = NUM_OBJECTS + 2 * NUM_COLORS       # 23 live stacked-table rows
_K_PAD = 24                                  # padded to a multiple of the f32 sublane (8)


def prepare_encoder_table(params):
    """Hoisted out of the hot path: run once whenever the embedding params change."""
    stacked = jnp.concatenate(
        [params["image_object_embedding"].astype(jnp.float32),
         params["image_color_embedding"].astype(jnp.float32),
         params["observed_color_embedding"].astype(jnp.float32)], axis=0)   # (23, E)
    stacked = jnp.pad(stacked, ((0, _K_PAD - _K_LIVE), (0, 0)))             # (K_PAD, E)
    return jnp.asarray(stacked.T)                                           # (E, K_PAD)


def _make_kernel(hw, num_batches):
    def kernel(oc_ref,       # SMEM (B,)       int32 — observed color per batch
               idx_ref,      # VMEM (C, blk)   int32 — image channels, positions in lanes
               table_t_ref,  # VMEM (E, K_PAD) f32   — stacked table, transposed
               out_ref):     # VMEM (E, blk)   f32   — lane-dense transposed output
        blk = out_ref.shape[1]
        k_pad = table_t_ref.shape[1]

        # Global flat position of each lane in this block; per-lane observed-color
        # index via a static unroll over the (small) batch dim.  The monotone
        # overwrite selects oc[b] for positions in [b*hw, (b+1)*hw) without any
        # vector integer division or gather.
        pos = pl.program_id(0) * blk + jax.lax.broadcasted_iota(jnp.int32, (1, blk), 1)
        oc_lane = jnp.zeros((1, blk), jnp.int32)
        for b in range(num_batches):
            oc_lane = jnp.where(pos >= b * hw, oc_ref[b], oc_lane)

        # Combined one-hot: rows = stacked-table index (sublanes), cols = position
        # (lanes).  The three index ranges are disjoint, so OR == sum of one-hots.
        iota_k = jax.lax.broadcasted_iota(jnp.int32, (k_pad, blk), 0)
        oh = ((iota_k == idx_ref[0:1, :])                    # object rows   [0, 11)
              | (iota_k == idx_ref[1:2, :] + _COL_OFF)       # color rows    [11, 17)
              | (iota_k == oc_lane + _OC_OFF)                 # obs-color rows[17, 23)
              ).astype(jnp.float32)                           # (K_PAD, blk)

        # Single MXU push: (E, K_PAD) @ (K_PAD, blk) -> (E, blk), full-lane stores.
        out_ref[...] = jnp.dot(table_t_ref[...], oh,
                               preferred_element_type=jnp.float32)

    return kernel


def impossibly_good_embedding_encoder(image, observed_color, table_t):
    """image: (B, H, W, C_meta) int, observed_color: (B,) int,
    table_t: (E, K_PAD) f32 (from prepare_encoder_table) -> (B, H*W*E) f32."""
    b, h, w, c = image.shape
    E = table_t.shape[0]
    hw = h * w
    n = b * hw

    # Only materializing input-side layout op: (B,H,W,C) -> (C, N), positions in
    # lanes.  Offsets and the observed-color broadcast happen inside the kernel.
    idx_cn = jnp.transpose(image.reshape(n, c).astype(jnp.int32))   # (C, N)
    oc = observed_color.astype(jnp.int32).reshape(b)                # (B,) -> SMEM

    # One grid step for small N (no per-step pipeline overhead); a 1-D parallel
    # grid over lanes only for large vectorized-env batches (2-TC split on v7x).
    blk = n if n <= 4096 else 2048
    grid = (pl.cdiv(n, blk),)

    cost = pl.CostEstimate(
        flops=2 * E * _K_PAD * n,
        transcendentals=0,
        bytes_accessed=idx_cn.size * 4 + table_t.size * 4 + E * n * 4 + b * 4)

    out_t = pl.pallas_call(
        _make_kernel(hw, b),
        out_shape=jax.ShapeDtypeStruct((E, n), jnp.float32),
        grid=grid,
        in_specs=[
            pl.BlockSpec(memory_space=pltpu.MemorySpace.SMEM),      # observed_color
            pl.BlockSpec((c, blk), lambda i: (0, i)),               # image channels
            pl.BlockSpec((E, _K_PAD), lambda i: (0, 0)),            # table (resident)
        ],
        out_specs=pl.BlockSpec((E, blk), lambda i: (0, i)),
        compiler_params=pltpu.CompilerParams(dimension_semantics=("parallel",)),
        cost_estimate=cost,
    )(oc, idx_cn, table_t)

    # (E, B*HW) lane-dense kernel output -> (B, HW*E): position-major /
    # embedding-minor, identical to torch's .reshape(b, h*w*E).
    return out_t.T.reshape(b, hw * E)


if __name__ == "__main__":
    key = jax.random.PRNGKey(0)
    k1, k2, k3, k4, k5, k6 = jax.random.split(key, 6)

    b, h, w, E = 2, 8, 8, 16   # out_channels = h*w*E = 1024; B*HW = 128 (one full lane)

    params = {
        "image_object_embedding": jax.random.normal(k1, (NUM_OBJECTS, E), jnp.float32),
        "image_color_embedding": jax.random.normal(k2, (NUM_COLORS, E), jnp.float32),
        "observed_color_embedding": jax.random.normal(k3, (NUM_COLORS, E), jnp.float32),
    }

    image = jnp.stack(
        [
            jax.random.randint(k4, (b, h, w), 0, NUM_OBJECTS),
            jax.random.randint(k5, (b, h, w), 0, NUM_COLORS),
            jnp.zeros((b, h, w), jnp.int32),   # unused "state" channel
        ],
        axis=-1,
    ).astype(jnp.int32)
    observed_color = jax.random.randint(k6, (b,), 0, NUM_COLORS).astype(jnp.int32)

    # Table prep hoisted out of the per-step path (re-run only when params change).
    table_t = jax.block_until_ready(prepare_encoder_table(params))

    fwd = jax.jit(impossibly_good_embedding_encoder)
    out = jax.block_until_ready(fwd(image, observed_color, table_t))

    # Pure-JAX reference of the PyTorch forward.
    ref = (params["image_object_embedding"][image[..., 0]]
           + params["image_color_embedding"][image[..., 1]]).reshape(b, h * w, E)
    ref = ref + params["observed_color_embedding"][observed_color][:, None, :]
    ref = ref.reshape(b, h * w * E)

    assert out.shape == (b, h * w * E)
    assert jnp.allclose(out, ref, atol=1e-5), float(jnp.max(jnp.abs(out - ref)))
    print("KERNEL_OK")
</pallas_src>

<mosaic_0001>
module attributes {stable_mosaic.version = 11 : i64} {
  func.func @kernel(%arg0: i32, %arg1: memref<2xi32, #tpu.memory_space<smem>>, %arg2: memref<3x128xi32, #tpu.memory_space<vmem>>, %arg3: memref<16x24xf32, #tpu.memory_space<vmem>>, %arg4: memref<16x128xf32, #tpu.memory_space<vmem>>) attributes {dimension_semantics = [#tpu.dimension_semantics<parallel>], iteration_bounds = array<i64: 1>, scalar_prefetch = 0 : i64, scratch_operands = 0 : i64, tpu.core_type = #tpu.core_type<tc>, window_params = [{transform_indices = @transform_0, window_bounds = array<i64: 2>}, {transform_indices = @transform_1, window_bounds = array<i64: 3, 128>}, {pipeline_mode = #tpu.pipeline_mode<synchronous>, transform_indices = @transform_2, window_bounds = array<i64: 16, 24>}, {transform_indices = @transform_3, window_bounds = array<i64: 16, 128>}]} {
    %c128_i32 = arith.constant 128 : i32
    %0 = arith.muli %arg0, %c128_i32 : i32
    %1 = tpu.iota {dimensions = array<i32: 1>} : vector<1x128xi32>
    %2 = vector.broadcast %0 : i32 to vector<1x128xi32>
    %3 = arith.addi %2, %1 : vector<1x128xi32>
    %c0_i32 = arith.constant 0 : i32
    %4 = vector.broadcast %c0_i32 : i32 to vector<1x128xi32>
    %c0_i32_0 = arith.constant 0 : i32
    %5 = vector.broadcast %c0_i32_0 : i32 to vector<1x128xi32>
    %6 = arith.cmpi sge, %3, %5 : vector<1x128xi32>
    %c0 = arith.constant 0 : index
    %7 = memref.load %arg1[%c0] : memref<2xi32, #tpu.memory_space<smem>>
    %8 = vector.broadcast %7 : i32 to vector<1x128xi32>
    %9 = arith.select %6, %8, %4 : vector<1x128xi1>, vector<1x128xi32>
    %c64_i32 = arith.constant 64 : i32
    %10 = vector.broadcast %c64_i32 : i32 to vector<1x128xi32>
    %11 = arith.cmpi sge, %3, %10 : vector<1x128xi32>
    %c1 = arith.constant 1 : index
    %12 = memref.load %arg1[%c1] : memref<2xi32, #tpu.memory_space<smem>>
    %13 = vector.broadcast %12 : i32 to vector<1x128xi32>
    %14 = arith.select %11, %13, %9 : vector<1x128xi1>, vector<1x128xi32>
    %15 = tpu.iota {dimensions = array<i32: 0>} : vector<24x128xi32>
    %c0_1 = arith.constant 0 : index
    %c0_2 = arith.constant 0 : index
    %16 = vector.load %arg2[%c0_1, %c0_2] : memref<3x128xi32, #tpu.memory_space<vmem>>, vector<1x128xi32>
    %17 = vector.broadcast %16 : vector<1x128xi32> to vector<24x128xi32>
    %18 = arith.cmpi eq, %15, %17 : vector<24x128xi32>
    %c1_3 = arith.constant 1 : index
    %c0_4 = arith.constant 0 : index
    %19 = vector.load %arg2[%c1_3, %c0_4] : memref<3x128xi32, #tpu.memory_space<vmem>>, vector<1x128xi32>
    %c11_i32 = arith.constant 11 : i32
    %20 = vector.broadcast %c11_i32 : i32 to vector<1x128xi32>
    %21 = arith.addi %19, %20 : vector<1x128xi32>
    %22 = vector.broadcast %21 : vector<1x128xi32> to vector<24x128xi32>
    %23 = arith.cmpi eq, %15, %22 : vector<24x128xi32>
    %24 = arith.ori %18, %23 : vector<24x128xi1>
    %c17_i32 = arith.constant 17 : i32
    %25 = vector.broadcast %c17_i32 : i32 to vector<1x128xi32>
    %26 = arith.addi %14, %25 : vector<1x128xi32>
    %27 = vector.broadcast %26 : vector<1x128xi32> to vector<24x128xi32>
    %28 = arith.cmpi eq, %15, %27 : vector<24x128xi32>
    %29 = arith.ori %24, %28 : vector<24x128xi1>
    %30 = arith.extui %29 : vector<24x128xi1> to vector<24x128xi32>
    %31 = arith.sitofp %30 : vector<24x128xi32> to vector<24x128xf32>
    %c0_5 = arith.constant 0 : index
    %c0_6 = arith.constant 0 : index
    %32 = vector.load %arg3[%c0_5, %c0_6] : memref<16x24xf32, #tpu.memory_space<vmem>>, vector<16x24xf32>
    %cst = arith.constant dense<0.000000e+00> : vector<16x128xf32>
    %33 = tpu.matmul %32, %31, %cst {dimension_numbers = #tpu.dot_dimension_numbers<[1], [0], [0], [1], [0, 0, 1, 1], [], []>} : vector<16x24xf32>, vector<24x128xf32>, vector<16x128xf32> -> vector<16x128xf32>
    %c0_7 = arith.constant 0 : index
    %c0_8 = arith.constant 0 : index
    %34 = vector.load %arg4[%c0_7, %c0_8] : memref<16x128xf32, #tpu.memory_space<vmem>>, vector<16x128xf32>
    tpu.vector_store %arg4[%c0_7, %c0_8], %33 {strides = array<i32>} : memref<16x128xf32, #tpu.memory_space<vmem>>, vector<16x128xf32>,
    return
  }
  func.func @transform_0(%arg0: i32) -> i32 {
    %c0_i32 = arith.constant 0 : i32
    %c0_i32_0 = arith.constant 0 : i32
    return %c0_i32 : i32
  }
  func.func @transform_1(%arg0: i32) -> (i32, i32) {
    %c0_i32 = arith.constant 0 : i32
    %c0_i32_0 = arith.constant 0 : i32
    return %c0_i32, %arg0 : i32, i32
  }
  func.func @transform_2(%arg0: i32) -> (i32, i32) {
    %c0_i32 = arith.constant 0 : i32
    %c0_i32_0 = arith.constant 0 : i32
    %c0_i32_1 = arith.constant 0 : i32
    return %c0_i32, %c0_i32_0 : i32, i32
  }
  func.func @transform_3(%arg0: i32) -> (i32, i32) {
    %c0_i32 = arith.constant 0 : i32
    %c0_i32_0 = arith.constant 0 : i32
    return %c0_i32, %arg0 : i32, i32
  }
}

</mosaic_0001>

<llo_original>
// kernel: impossibly_good_embedding_encoder.1
$region0: #{impossibly_good_embedding_encoder.1}
  #allocation0 [shape = 'u32[]', space=smem, size = 0x4, offset = 0x4, fixed_abs, tag = 'smem constant byte address 0x4 - core index']
  #allocation1 [shape = 'u32[144,128]{1,0:T(1,128)}', space=vmem, size = 0x12000, scoped, tag = 'internal scratch']
  %s0 = inlined_call_operand.vmem [shape: s32[2], index: 0, kind: input, shape index: {}]
  %s1 = inlined_call_operand.vmem [shape: s32[3,128], index: 1, kind: input, shape index: {}]
  %s2 = inlined_call_operand.vmem [shape: f32[16,24], index: 2, kind: input, shape index: {}]
  %s3 = inlined_call_operand.vmem [shape: f32[16,128], index: 3, kind: output, shape index: {}]
  %s4 = sld [smem:[#allocation0]]
  $region26: #{impossibly_good_embedding_encoder.1} parent=0
    _
  %s6 = ssub.s32 1, %s4
  %s7 = scalar_select 0, %s6, %s4
  $region1: #{impossibly_good_embedding_encoder.1} parent=0
    #allocation2 [shape = 'u8[512]{0}', space=smem, size = 0x200, scoped, tag = 'input window, operand 0, single buffered']
    #allocation3 [shape = 's32[1]{0}', space=sflag, size = 0x4, scoped, tag = 'scoped memory for impossibly_good_embedding_encoder.1']
    %8 = vsyncpa [#allocation3], 0
    // Predicated region
    $region2: #{impossibly_good_embedding_encoder.1} parent=1 // pred_check
      _
    $region3: #{impossibly_good_embedding_encoder.1} parent=1 // pred_check_branch
      %10 = sbr.rel (0) target = $region5
    $region4: #{impossibly_good_embedding_encoder.1} parent=1 // pred_region
      %s12 = ssub.s32 16, 16
      %13 = vsyncadd [#allocation3], %s12
      %s15 = sshll.u32 %s0, 4
      %s16 = int_to_ptr.vmem [resolvable:$true] %s15
      %18 = dma.vmem_to_smem %s16, 16, [#allocation2], [#allocation3]
    $region5: #{impossibly_good_embedding_encoder.1} parent=1 // pred_fallthru
      _
    // Predicated region
    $region6: #{impossibly_good_embedding_encoder.1} parent=1 // pred_check
      _
    $region7: #{impossibly_good_embedding_encoder.1} parent=1 // pred_check_branch
      %20 = sbr.rel (0) target = $region9
    $region8: #{impossibly_good_embedding_encoder.1} parent=1 // pred_region
      _
    $region9: #{impossibly_good_embedding_encoder.1} parent=1 // pred_fallthru
      _
    // Predicated region
    $region10: #{impossibly_good_embedding_encoder.1} parent=1 // pred_check
      _
    $region11: #{impossibly_good_embedding_encoder.1} parent=1 // pred_check_branch
      %22 = sbr.rel (0) target = $region13
    $region12: #{impossibly_good_embedding_encoder.1} parent=1 // pred_region
      _
    $region13: #{impossibly_good_embedding_encoder.1} parent=1 // pred_fallthru
      _
    // Predicated region
    $region14: #{impossibly_good_embedding_encoder.1} parent=1 // pred_check
      _
    $region15: #{impossibly_good_embedding_encoder.1} parent=1 // pred_check_branch
      %24 = sbr.rel (0) target = $region17
    $region16: #{impossibly_good_embedding_encoder.1} parent=1 // pred_region
      %25 = dma.done [#allocation3], 16
    $region17: #{impossibly_good_embedding_encoder.1} parent=1 // pred_fallthru
      _
    %26 = sfence
    %s27 = smul.u32 0, 128
    %v28 = vlaneseq
    %v29 = vand.u32 %v28, 127
    %v30 = vstv %s27
    %v31 = vadd.s32 %v30, %v29
    %vm32 = vcmp.ge.s32.totalorder %v31, 0
    %s33 = sld [smem:[#allocation2]]
    %v34 = vstv %s33
    %v35 = vsel %vm32, %v34, 0
    %vm36 = vcmp.ge.s32.totalorder %v31, 64
    %s37 = sld [smem:[#allocation2 + $0x1]]
    %v38 = vstv %s37
    %v39 = vsel %vm36, %v38, %v35
    %v40 = vlaneseq
    %v41 = vshrl.u32 %v40, 7
    %v42 = vadd.s32 %v41, 8
    %v43 = vadd.s32 %v41, 16
    %v44 = vld [vmem:[%s1] sm:$0x1]
    %v45 = vlaneseq
    %v46 = vshrl.u32 %v45, 7
    %v47 = vsub.s32 0, %v46
    %v48 = vrot.slane %v44, %v47
    %vm49 = vcmp.eq.s32.totalorder %v41, %v48
    %vm50 = vcmp.eq.s32.totalorder %v42, %v48
    %vm51 = vcmp.eq.s32.totalorder %v43, %v48
    %v52 = vld [vmem:[%s1 + $0x1] sm:$0x1]
    %v53 = vadd.s32 %v52, 11
    %v54 = vlaneseq
    %v55 = vshrl.u32 %v54, 7
    %v56 = vsub.s32 0, %v55
    %v57 = vrot.slane %v53, %v56
    %vm58 = vcmp.eq.s32.totalorder %v41, %v57
    %vm59 = vcmp.eq.s32.totalorder %v42, %v57
    %vm60 = vcmp.eq.s32.totalorder %v43, %v57
    %vm61 = vmor %vm49, %vm58
    %vm62 = vmor %vm50, %vm59
    %vm63 = vmor %vm51, %vm60
    %v64 = vadd.s32 %v39, 17
    %vm65 = vcmp.eq.s32.totalorder %v41, %v64
    %vm66 = vcmp.eq.s32.totalorder %v42, %v64
    %vm67 = vcmp.eq.s32.totalorder %v43, %v64
    %vm68 = vmor %vm61, %vm65
    %vm69 = vmor %vm62, %vm66
    %vm70 = vmor %vm63, %vm67
    %v71 = vsel %vm68, 1, 0
    %v72 = vsel %vm69, 1, 0
    %v73 = vsel %vm70, 1, 0
    %v74 = vcvt.s32.f32 %v71
    %v75 = vcvt.s32.f32 %v72
    %v76 = vcvt.s32.f32 %v73
    %v77 = vld [vmem:[%s2] sm:$0xff]
    %v78 = vld [vmem:[%s2 + $0x8] sm:$0xff]
    %vm79 = vcmask 195584
    %v81 = vsel %vm79, %v77, 0
    %v84 = vsel %vm79, %v78, 0
    %86 = vmatprep.subr.mxu0 0.0
    %87 = vmatpush1.msra.mxu0 %v74
    %88 = vmatprep.subr.mxu0 0.0
    %89 = vmatpush1.msra.mxu0 %v75
    %90 = vmatprep.subr.mxu0 0.0
    %91 = vmatpush1.msra.mxu0 %v76
    %92 = vmatprep.subr.mxu0 0.0
    %93 = vmatpush1.msra.mxu0 0.0
    %94 = vmatprep.subr.mxu0 0.0
    %95 = vmatpush1.msra.mxu0 0.0
    %96 = vmatprep.subr.mxu0 0.0
    %97 = vmatpush1.msra.mxu0 0.0
    %98 = vmatprep.subr.mxu0 0.0
    %99 = vmatpush1.msra.mxu0 0.0
    %100 = vmatprep.subr.mxu0 0.0
    %101 = vmatpush1.msra.mxu0 0.0
    %102 = vmatprep.subr.mxu0 0.0
    %103 = vmatpush1.msra.mxu0 0.0
    %104 = vmatprep.subr.mxu0 0.0
    %105 = vmatpush1.msra.mxu0 0.0
    %106 = vmatprep.subr.mxu0 0.0
    %107 = vmatpush1.msra.mxu0 0.0
    %108 = vmatprep.subr.mxu0 0.0
    %109 = vmatpush1.msra.mxu0 0.0
    %110 = vmatprep.subr.mxu0 0.0
    %111 = vmatpush1.msra.mxu0 0.0
    %112 = vmatprep.subr.mxu0 0.0
    %113 = vmatpush1.msra.mxu0 0.0
    %114 = vmatprep.subr.mxu0 0.0
    %115 = vmatpush1.msra.mxu0 0.0
    %116 = vmatprep.subr.mxu0 0.0
    %117 = vmatpush1.msra.mxu0 0.0
    %118 = vmatprep.subr.mxu0 0.0
    %119 = vmatpush1.msra.mxu0 0.0
    %120 = vmatprep.subr.mxu0 0.0
    %121 = vmatpush1.msra.mxu0 0.0
    %122 = vmatprep.subr.mxu0 0.0
    %123 = vmatpush1.msra.mxu0 0.0
    %124 = vmatprep.subr.mxu0 0.0
    %125 = vmatpush1.msra.mxu0 0.0
    %126 = vmatprep.subr.mxu0 0.0
    %127 = vmatpush1.msra.mxu0 0.0
    %128 = vmatprep.subr.mxu0 0.0
    %129 = vmatpush1.msra.mxu0 0.0
    %130 = vmatprep.subr.mxu0 0.0
    %131 = vmatpush1.msra.mxu0 0.0
    %132 = vmatprep.subr.mxu0 0.0
    %133 = vmatpush1.msra.mxu0 0.0
    %134 = vmatprep.subr.mxu0 0.0
    %135 = vmatpush1.msra.mxu0 0.0
    %136 = vmatprep.subr.mxu0 0.0
    %137 = vmatpush1.msra.mxu0 0.0
    %138 = vmatprep.subr.mxu0 0.0
    %139 = vmatpush1.msra.mxu0 0.0
    %140 = vmatprep.subr.mxu0 0.0
    %141 = vmatpush1.msra.mxu0 0.0
    %142 = vmatprep.subr.mxu0 0.0
    %143 = vmatpush1.msra.mxu0 0.0
    %144 = vmatprep.subr.mxu0 0.0
    %145 = vmatpush1.msra.mxu0 0.0
    %146 = vmatprep.subr.mxu0 0.0
    %147 = vmatpush1.msra.mxu0 0.0
    %148 = vmatprep.subr.mxu0 0.0
    %149 = vmatpush1.msra.mxu0 0.0
    %150 = vmatprep.mubr.f32.mxu0 0.0
    %151 = vmatmul.mubr.f32.gmra.mrb[0].mxu0 %v81
    %v152 = vpop.f32.mrb[0].mxu0
    %v153 = vadd.f32 0.0, %v152
    %v154 = vpop.f32.mrb[0].mxu0
    %155 = vmatprep.mubr.f32.mxu0 0.0
    %156 = vmatmul.mubr.f32.gmra.mrb[0].mxu0 %v84
    %v157 = vpop.f32.mrb[0].mxu0
    %v158 = vadd.f32 0.0, %v157
    %v159 = vpop.f32.mrb[0].mxu0
    %160 = vdwg.mxu0
    %161 = vst [vmem:[%s3] sm:$0xff] %v153
    %162 = vst [vmem:[%s3 + $0x8] sm:$0xff] %v158
    // Predicated region
    $region18: #{impossibly_good_embedding_encoder.1} parent=1 // pred_check
      _
    $region19: #{impossibly_good_embedding_encoder.1} parent=1 // pred_check_branch
      %164 = sbr.rel (0) target = $region21
    $region20: #{impossibly_good_embedding_encoder.1} parent=1 // pred_region
      _
    $region21: #{impossibly_good_embedding_encoder.1} parent=1 // pred_fallthru
      _
    // Predicated region
    $region22: #{impossibly_good_embedding_encoder.1} parent=1 // pred_check
      _
    $region23: #{impossibly_good_embedding_encoder.1} parent=1 // pred_check_branch
      %166 = sbr.rel (0) target = $region25
    $region24: #{impossibly_good_embedding_encoder.1} parent=1 // pred_region
      _
    $region25: #{impossibly_good_embedding_encoder.1} parent=1 // pred_fallthru
      _
    %167 = vsyncpa [#allocation3], 1

</llo_original>
